<compile_context>
chip_gen: v5e
topology: v5e:2x2
jax: 0.10.0
libtpu: 0.0.40
codegen_flags: <defaults>
</compile_context>

<pallas_src>
import functools

import jax
import jax.numpy as jnp
import numpy as np
from jax import lax
from jax.experimental import pallas as pl
from jax.experimental.pallas import tpu as pltpu

GAMMA = 0.5


def _opl_kernel(a_ref, b_ref, out_ref, acc_ref, *, batch_size, tile_b):
    """Processes a tile of `tile_b` batch elements per grid step.

    a_ref/b_ref: (TB, N, D) VMEM tiles.
    out_ref:     (1, 128) lane-dense output, written ONCE on the last step:
                 lane 0 = total loss, lane 1 = last pos cosine, lane 2 = last neg cosine.
    acc_ref:     (TB, 1) VMEM scratch — per-slot partial loss accumulator,
                 resident across the grid (no per-step output writeback).
    """
    step = pl.program_id(0)
    last_step = pl.num_programs(0) - 1

    A = a_ref[...]  # (TB, N, D)
    B = b_ref[...]  # (TB, N, D)

    # Batched Gram matrices on the MXU, contracting the last dims directly
    # (no explicit transpose materialized).
    GA = jnp.einsum('bnd,bmd->bnm', A, A, preferred_element_type=jnp.float32)
    GB = jnp.einsum('bnd,bmd->bnm', B, B, preferred_element_type=jnp.float32)

    # F.normalize(p=2, dim=1) with eps=1e-12, fused via rsqrt (runs on the EUP):
    # 1/max(||row||, 1e-12) == rsqrt(max(||row||^2, 1e-24)).
    ssA = jnp.sum(GA * GA, axis=2, keepdims=True)  # (TB, N, 1)
    ssB = jnp.sum(GB * GB, axis=2, keepdims=True)
    rA = lax.rsqrt(jnp.maximum(ssA, 1e-24))
    rB = lax.rsqrt(jnp.maximum(ssB, 1e-24))
    A_pos = GA * rA
    B_n = GB * rB

    # torch.cosine_similarity(dim=1, eps=1e-8), mean over rows. The norms of
    # the normalized rows are recovered from the already-computed squared sums
    # (no extra XLU reductions / sqrt+div), and the eps path is preserved:
    # dot * rsqrt(max(n1^2*n2^2, 1e-16)) == dot / max(n1*n2, 1e-8).
    dot = jnp.sum(A_pos * B_n, axis=2, keepdims=True)  # (TB, N, 1)
    n1sq = ssA * rA * rA
    n2sq = ssB * rB * rB
    cos = dot * lax.rsqrt(jnp.maximum(n1sq * n2sq, 1e-16))

    pos = jnp.mean(cos, axis=1)          # (TB, 1) per-element pos cosine
    neg = -pos                           # A_neg = -A_pos  =>  exact negation
    loss = 1.0 - pos + jnp.abs(GAMMA * neg)

    # Mask out padded batch elements (global index >= batch_size contributes 0).
    g_idx = step * tile_b + lax.broadcasted_iota(jnp.int32, (tile_b, 1), 0)
    valid = (g_idx < batch_size).astype(jnp.float32)

    @pl.when(step == 0)
    def _():
        acc_ref[...] = jnp.zeros_like(acc_ref)

    acc_ref[...] += loss * valid

    # Single lane-dense store of all three scalars on the final step only.
    @pl.when(step == last_step)
    def _():
        total = jnp.sum(acc_ref[...], axis=0, keepdims=True)       # (1, 1)
        local_last = (batch_size - 1) % tile_b                     # static
        pos_last = pos[local_last:local_last + 1, :]               # (1, 1)
        neg_last = -pos_last
        lane = lax.broadcasted_iota(jnp.int32, (1, 128), 1)
        vec = jnp.where(lane == 0, total, jnp.zeros((1, 128), jnp.float32))
        vec = jnp.where(lane == 1, pos_last, vec)
        vec = jnp.where(lane == 2, neg_last, vec)
        out_ref[...] = vec


def _choose_tile_b(batch_size, n, d):
    """Pick the largest batch tile that comfortably fits conservative VMEM budgets
    (v5e's 16 MiB default scoped limit, v7x's 64 MiB physical VMEM)."""
    vmem_budget = 8 * 1024 * 1024
    # double-buffered inputs (2 arrays x 2 bufs) + Gram/normalized intermediates + slack
    per_elem = 16 * n * d + 24 * n * n + 4096
    tb = max(1, min(batch_size, vmem_budget // per_elem, 256))
    return int(tb)


def orthogonal_projection_loss(featureA, featureB):
    Bsz, N, D = featureA.shape
    assert featureB.shape == (Bsz, N, D)

    TB = _choose_tile_b(Bsz, N, D)
    num_tiles = (Bsz + TB - 1) // TB
    Bp = num_tiles * TB
    if Bp != Bsz:
        pad = ((0, Bp - Bsz), (0, 0), (0, 0))
        featureA = jnp.pad(featureA, pad)
        featureB = jnp.pad(featureB, pad)

    kernel = functools.partial(_opl_kernel, batch_size=Bsz, tile_b=TB)

    out = pl.pallas_call(
        kernel,
        out_shape=jax.ShapeDtypeStruct((1, 128), jnp.float32),
        grid_spec=pltpu.PrefetchScalarGridSpec(
            num_scalar_prefetch=0,
            grid=(num_tiles,),
            in_specs=[
                pl.BlockSpec((TB, N, D), lambda b: (b, 0, 0)),
                pl.BlockSpec((TB, N, D), lambda b: (b, 0, 0)),
            ],
            out_specs=pl.BlockSpec((1, 128), lambda b: (0, 0)),
            scratch_shapes=[pltpu.VMEM((TB, 1), jnp.float32)],
        ),
        compiler_params=pltpu.CompilerParams(
            dimension_semantics=("arbitrary",),
            vmem_limit_bytes=32 * 1024 * 1024,
        ),
    )(featureA, featureB)

    # Module returns (total_loss / 64, last pos cosine, last neg cosine)
    return out[0, 0] / 64.0, out[0, 1], out[0, 2]


def _reference(featureA, featureB):
    """Pure-JAX reference mirroring the PyTorch forward."""
    total = 0.0
    pos_last = 0.0
    neg_last = 0.0
    for A, B in zip(featureA, featureB):
        GA = A @ A.T
        GB = B @ B.T
        A_pos = GA / jnp.maximum(jnp.linalg.norm(GA, axis=1, keepdims=True), 1e-12)
        B_n = GB / jnp.maximum(jnp.linalg.norm(GB, axis=1, keepdims=True), 1e-12)
        dot = jnp.sum(A_pos * B_n, axis=1)
        n1 = jnp.linalg.norm(A_pos, axis=1)
        n2 = jnp.linalg.norm(B_n, axis=1)
        pos = jnp.mean(dot / jnp.maximum(n1 * n2, 1e-8))
        neg = -pos
        loss = 1.0 - pos + jnp.abs(GAMMA * neg)
        total = total + loss
        pos_last, neg_last = pos, neg
    return total / 64.0, pos_last, neg_last


if __name__ == "__main__":
    key = jax.random.PRNGKey(0)
    kA, kB = jax.random.split(key)
    Bsz, N, D = 2, 8, 32
    featureA = jax.random.normal(kA, (Bsz, N, D), dtype=jnp.float32)
    featureB = jax.random.normal(kB, (Bsz, N, D), dtype=jnp.float32)

    out = orthogonal_projection_loss(featureA, featureB)
    out = jax.block_until_ready(out)

    ref = _reference(featureA, featureB)
    for o, r in zip(out, ref):
        np.testing.assert_allclose(np.asarray(o), np.asarray(r), rtol=2e-5, atol=1e-5)

    print("KERNEL_OK")
</pallas_src>

<mosaic_0001>
module attributes {stable_mosaic.version = 11 : i64} {
  func.func @_opl_kernel(%arg0: i32, %arg1: memref<2x8x32xf32, #tpu.memory_space<vmem>>, %arg2: memref<2x8x32xf32, #tpu.memory_space<vmem>>, %arg3: memref<1x128xf32, #tpu.memory_space<vmem>>, %arg4: memref<2x1xf32, #tpu.memory_space<vmem>>) attributes {dimension_semantics = [#tpu.dimension_semantics<arbitrary>], iteration_bounds = array<i64: 1>, scalar_prefetch = 0 : i64, scratch_operands = 1 : i64, tpu.core_type = #tpu.core_type<tc>, window_params = [{transform_indices = @transform_0, window_bounds = array<i64: 2, 8, 32>}, {transform_indices = @transform_1, window_bounds = array<i64: 2, 8, 32>}, {pipeline_mode = #tpu.pipeline_mode<synchronous>, transform_indices = @transform_2, window_bounds = array<i64: 1, 128>}]} {
    %c0 = arith.constant 0 : index
    %c0_0 = arith.constant 0 : index
    %c0_1 = arith.constant 0 : index
    %0 = vector.load %arg1[%c0, %c0_0, %c0_1] : memref<2x8x32xf32, #tpu.memory_space<vmem>>, vector<2x8x32xf32>
    %c0_2 = arith.constant 0 : index
    %c0_3 = arith.constant 0 : index
    %c0_4 = arith.constant 0 : index
    %1 = vector.load %arg2[%c0_2, %c0_3, %c0_4] : memref<2x8x32xf32, #tpu.memory_space<vmem>>, vector<2x8x32xf32>
    "tpu.trace_start"() <{level = 10 : i32, message = "bnd,bmd->bnm"}> : () -> ()
    %cst = arith.constant dense<0.000000e+00> : vector<2x8x8xf32>
    %2 = tpu.matmul %0, %0, %cst {dimension_numbers = #tpu.dot_dimension_numbers<[2], [2], [1], [1], [0, 0, 0, 1, 1, 1], [0], [0]>} : vector<2x8x32xf32>, vector<2x8x32xf32>, vector<2x8x8xf32> -> vector<2x8x8xf32>
    %cst_5 = arith.constant dense<0.000000e+00> : vector<2x8x8xf32>
    %3 = tpu.matmul %1, %1, %cst_5 {dimension_numbers = #tpu.dot_dimension_numbers<[2], [2], [1], [1], [0, 0, 0, 1, 1, 1], [0], [0]>} : vector<2x8x32xf32>, vector<2x8x32xf32>, vector<2x8x8xf32> -> vector<2x8x8xf32>
    "tpu.trace_stop"() : () -> ()
    %4 = arith.mulf %2, %2 : vector<2x8x8xf32>
    %cst_6 = arith.constant dense<0.000000e+00> : vector<2x8xf32>
    %5 = vector.multi_reduction <add>, %4, %cst_6 [2] : vector<2x8x8xf32> to vector<2x8xf32>
    %6 = vector.shape_cast %5 : vector<2x8xf32> to vector<2x8x1xf32>
    %7 = arith.mulf %3, %3 : vector<2x8x8xf32>
    %cst_7 = arith.constant dense<0.000000e+00> : vector<2x8xf32>
    %8 = vector.multi_reduction <add>, %7, %cst_7 [2] : vector<2x8x8xf32> to vector<2x8xf32>
    %9 = vector.shape_cast %8 : vector<2x8xf32> to vector<2x8x1xf32>
    %cst_8 = arith.constant 1.000000e-24 : f32
    %10 = vector.broadcast %cst_8 : f32 to vector<2x8x1xf32>
    %11 = arith.maximumf %6, %10 : vector<2x8x1xf32>
    %12 = math.rsqrt %11 : vector<2x8x1xf32>
    %cst_9 = arith.constant 1.000000e-24 : f32
    %13 = vector.broadcast %cst_9 : f32 to vector<2x8x1xf32>
    %14 = arith.maximumf %9, %13 : vector<2x8x1xf32>
    %15 = math.rsqrt %14 : vector<2x8x1xf32>
    %16 = vector.broadcast %12 : vector<2x8x1xf32> to vector<2x8x8xf32>
    %17 = arith.mulf %2, %16 : vector<2x8x8xf32>
    %18 = vector.broadcast %15 : vector<2x8x1xf32> to vector<2x8x8xf32>
    %19 = arith.mulf %3, %18 : vector<2x8x8xf32>
    %20 = arith.mulf %17, %19 : vector<2x8x8xf32>
    %cst_10 = arith.constant dense<0.000000e+00> : vector<2x8xf32>
    %21 = vector.multi_reduction <add>, %20, %cst_10 [2] : vector<2x8x8xf32> to vector<2x8xf32>
    %22 = vector.shape_cast %21 : vector<2x8xf32> to vector<2x8x1xf32>
    %23 = arith.mulf %6, %12 : vector<2x8x1xf32>
    %24 = arith.mulf %23, %12 : vector<2x8x1xf32>
    %25 = arith.mulf %9, %15 : vector<2x8x1xf32>
    %26 = arith.mulf %25, %15 : vector<2x8x1xf32>
    %27 = arith.mulf %24, %26 : vector<2x8x1xf32>
    %cst_11 = arith.constant 1.000000e-16 : f32
    %28 = vector.broadcast %cst_11 : f32 to vector<2x8x1xf32>
    %29 = arith.maximumf %27, %28 : vector<2x8x1xf32>
    %30 = math.rsqrt %29 : vector<2x8x1xf32>
    %31 = arith.mulf %22, %30 : vector<2x8x1xf32>
    %cst_12 = arith.constant dense<0.000000e+00> : vector<2x1xf32>
    %32 = vector.multi_reduction <add>, %31, %cst_12 [1] : vector<2x8x1xf32> to vector<2x1xf32>
    %cst_13 = arith.constant 8.000000e+00 : f32
    %33 = vector.broadcast %cst_13 : f32 to vector<2x1xf32>
    %34 = arith.divf %32, %33 : vector<2x1xf32>
    %cst_14 = arith.constant 0.000000e+00 : f32
    %35 = vector.broadcast %cst_14 : f32 to vector<2x1xf32>
    %36 = arith.subf %35, %34 : vector<2x1xf32>
    %cst_15 = arith.constant 1.000000e+00 : f32
    %37 = vector.broadcast %cst_15 : f32 to vector<2x1xf32>
    %38 = arith.subf %37, %34 : vector<2x1xf32>
    %cst_16 = arith.constant 5.000000e-01 : f32
    %39 = vector.broadcast %cst_16 : f32 to vector<2x1xf32>
    %40 = arith.mulf %39, %36 : vector<2x1xf32>
    %41 = math.absf %40 : vector<2x1xf32>
    %42 = arith.addf %38, %41 : vector<2x1xf32>
    %c2_i32 = arith.constant 2 : i32
    %43 = arith.muli %arg0, %c2_i32 : i32
    %44 = tpu.iota {dimensions = array<i32: 0>} : vector<2x1xi32>
    %45 = vector.broadcast %43 : i32 to vector<2x1xi32>
    %46 = arith.addi %45, %44 : vector<2x1xi32>
    %c2_i32_17 = arith.constant 2 : i32
    %47 = vector.broadcast %c2_i32_17 : i32 to vector<2x1xi32>
    %48 = arith.cmpi slt, %46, %47 : vector<2x1xi32>
    %49 = arith.extui %48 : vector<2x1xi1> to vector<2x1xi32>
    %50 = arith.sitofp %49 : vector<2x1xi32> to vector<2x1xf32>
    %c0_i32 = arith.constant 0 : i32
    %51 = arith.cmpi eq, %arg0, %c0_i32 : i32
    %52 = arith.extui %51 : i1 to i32
    %c0_i32_18 = arith.constant 0 : i32
    %53 = arith.cmpi ne, %52, %c0_i32_18 : i32
    scf.if %53 {
      %cst_25 = arith.constant 0.000000e+00 : f32
      %61 = vector.broadcast %cst_25 : f32 to vector<2x1xf32>
      %c0_26 = arith.constant 0 : index
      %c0_27 = arith.constant 0 : index
      %62 = vector.load %arg4[%c0_26, %c0_27] : memref<2x1xf32, #tpu.memory_space<vmem>>, vector<2x1xf32>
      tpu.vector_store %arg4[%c0_26, %c0_27], %61 {strides = array<i32>} : memref<2x1xf32, #tpu.memory_space<vmem>>, vector<2x1xf32>,
    } else {
    }
    %c0_19 = arith.constant 0 : index
    %c0_20 = arith.constant 0 : index
    %54 = vector.load %arg4[%c0_19, %c0_20] : memref<2x1xf32, #tpu.memory_space<vmem>>, vector<2x1xf32>
    %55 = arith.mulf %42, %50 : vector<2x1xf32>
    %56 = arith.addf %54, %55 : vector<2x1xf32>
    %c0_21 = arith.constant 0 : index
    %c0_22 = arith.constant 0 : index
    %57 = vector.load %arg4[%c0_21, %c0_22] : memref<2x1xf32, #tpu.memory_space<vmem>>, vector<2x1xf32>
    tpu.vector_store %arg4[%c0_21, %c0_22], %56 {strides = array<i32>} : memref<2x1xf32, #tpu.memory_space<vmem>>, vector<2x1xf32>,
    %c0_i32_23 = arith.constant 0 : i32
    %58 = arith.cmpi eq, %arg0, %c0_i32_23 : i32
    %59 = arith.extui %58 : i1 to i32
    %c0_i32_24 = arith.constant 0 : i32
    %60 = arith.cmpi ne, %59, %c0_i32_24 : i32
    scf.if %60 {
      %c0_25 = arith.constant 0 : index
      %c0_26 = arith.constant 0 : index
      %61 = vector.load %arg4[%c0_25, %c0_26] : memref<2x1xf32, #tpu.memory_space<vmem>>, vector<2x1xf32>
      %cst_27 = arith.constant dense<0.000000e+00> : vector<1xf32>
      %62 = vector.multi_reduction <add>, %61, %cst_27 [0] : vector<2x1xf32> to vector<1xf32>
      %63 = vector.shape_cast %62 : vector<1xf32> to vector<1x1xf32>
      %64 = vector.extract_strided_slice %34 {offsets = [1, 0], sizes = [1, 1], strides = [1, 1]} : vector<2x1xf32> to vector<1x1xf32>
      %cst_28 = arith.constant 0.000000e+00 : f32
      %65 = vector.broadcast %cst_28 : f32 to vector<1x1xf32>
      %66 = arith.subf %65, %64 : vector<1x1xf32>
      %67 = tpu.iota {dimensions = array<i32: 1>} : vector<1x128xi32>
      %c0_i32_29 = arith.constant 0 : i32
      %68 = vector.broadcast %c0_i32_29 : i32 to vector<1x128xi32>
      %69 = arith.cmpi eq, %67, %68 : vector<1x128xi32>
      %cst_30 = arith.constant 0.000000e+00 : f32
      %70 = vector.broadcast %cst_30 : f32 to vector<1x128xf32>
      %71 = vector.shape_cast %63 : vector<1x1xf32> to vector<1x1xf32>
      %72 = vector.broadcast %71 : vector<1x1xf32> to vector<1x128xf32>
      %73 = arith.select %69, %72, %70 : vector<1x128xi1>, vector<1x128xf32>
      %c1_i32 = arith.constant 1 : i32
      %74 = vector.broadcast %c1_i32 : i32 to vector<1x128xi32>
      %75 = arith.cmpi eq, %67, %74 : vector<1x128xi32>
      %76 = vector.shape_cast %64 : vector<1x1xf32> to vector<1x1xf32>
      %77 = vector.broadcast %76 : vector<1x1xf32> to vector<1x128xf32>
      %78 = arith.select %75, %77, %73 : vector<1x128xi1>, vector<1x128xf32>
      %c2_i32_31 = arith.constant 2 : i32
      %79 = vector.broadcast %c2_i32_31 : i32 to vector<1x128xi32>
      %80 = arith.cmpi eq, %67, %79 : vector<1x128xi32>
      %81 = vector.shape_cast %66 : vector<1x1xf32> to vector<1x1xf32>
      %82 = vector.broadcast %81 : vector<1x1xf32> to vector<1x128xf32>
      %83 = arith.select %80, %82, %78 : vector<1x128xi1>, vector<1x128xf32>
      %c0_32 = arith.constant 0 : index
      %c0_33 = arith.constant 0 : index
      %84 = vector.load %arg3[%c0_32, %c0_33] : memref<1x128xf32, #tpu.memory_space<vmem>>, vector<1x128xf32>
      tpu.vector_store %arg3[%c0_32, %c0_33], %83 {strides = array<i32>} : memref<1x128xf32, #tpu.memory_space<vmem>>, vector<1x128xf32>,
    } else {
    }
    return
  }
  func.func @transform_0(%arg0: i32) -> (i32, i32, i32) {
    %c0_i32 = arith.constant 0 : i32
    %c0_i32_0 = arith.constant 0 : i32
    %c0_i32_1 = arith.constant 0 : i32
    return %arg0, %c0_i32, %c0_i32_0 : i32, i32, i32
  }
  func.func @transform_1(%arg0: i32) -> (i32, i32, i32) {
    %c0_i32 = arith.constant 0 : i32
    %c0_i32_0 = arith.constant 0 : i32
    %c0_i32_1 = arith.constant 0 : i32
    return %arg0, %c0_i32, %c0_i32_0 : i32, i32, i32
  }
  func.func @transform_2(%arg0: i32) -> (i32, i32) {
    %c0_i32 = arith.constant 0 : i32
    %c0_i32_0 = arith.constant 0 : i32
    %c0_i32_1 = arith.constant 0 : i32
    return %c0_i32, %c0_i32_0 : i32, i32
  }
}

</mosaic_0001>

<llo_original>
// kernel: tpu_custom_call.1
$region0: #{tpu_custom_call.1}
  #allocation0 [shape = 'u32[]', space=smem, size = 0x4, offset = 0x4, fixed_abs, tag = 'smem constant byte address 0x4 - core index']
  #allocation1 [shape = 'u32[72,128]{1,0:T(1,128)}', space=vmem, size = 0x9000, scoped, tag = 'internal scratch']
  #allocation2 [shape = 'f32[2,1]{1,0:T(2,128)}', space=vmem, size = 0x400, scoped, tag = 'scratch operand']
  %s0 = inlined_call_operand.hbm [shape: f32[2,8,32], index: 0, kind: input, shape index: {}]
  %s1 = inlined_call_operand.hbm [shape: f32[2,8,32], index: 1, kind: input, shape index: {}]
  %s2 = inlined_call_operand.hbm [shape: f32[1,128], index: 2, kind: output, shape index: {}]
  %s3 = sld [smem:[#allocation0]]
  $region34: #{tpu_custom_call.1} parent=0
    _
  %s5 = ssub.s32 1, %s3
  %s6 = scalar_select 0, %s5, %s3
  $region1: #{tpu_custom_call.1} parent=0
    #allocation3 [shape = 'u8[8192]{0}', space=vmem, size = 0x2000, scoped, tag = 'input window, operand 0, single buffered']
    #allocation4 [shape = 's32[1]{0}', space=sflag, size = 0x4, scoped, tag = 'scoped memory for tpu_custom_call.1']
    #allocation5 [shape = 's32[1]{0}', space=sflag, size = 0x4, scoped, tag = 'scoped memory for tpu_custom_call.1']
    #allocation6 [shape = 'u8[8192]{0}', space=vmem, size = 0x2000, scoped, tag = 'input window, operand 1, single buffered']
    #allocation7 [shape = 's32[1]{0}', space=sflag, size = 0x4, scoped, tag = 'scoped memory for tpu_custom_call.1']
    #allocation8 [shape = 'u8[512]{0}', space=vmem, size = 0x400, scoped, tag = 'output window, operand 0, single buffered']
    %7 = vsyncpa [#allocation4], 0
    %8 = vsyncpa [#allocation7], 0
    %9 = vsyncpa [#allocation5], 0
    // Predicated region
    $region2: #{tpu_custom_call.1} parent=1 // pred_check
      _
    $region3: #{tpu_custom_call.1} parent=1 // pred_check_branch
      %11 = sbr.rel (0) target = $region5
    $region4: #{tpu_custom_call.1} parent=1 // pred_region
      %13 = vsyncadd [#allocation4], 0
      %s14 = sshll.u32 %s0, 4
      %s15 = int_to_ptr.hbm [resolvable:$true] %s14
      %s16 = sshll.u32 [#allocation3], 4
      %s17 = int_to_ptr.vmem [resolvable:$true] %s16
      %22 = dma.hbm_to_vmem [thread:$0]  %s15, 256, %s17, [#allocation4], 128, 128, 8
    $region5: #{tpu_custom_call.1} parent=1 // pred_fallthru
      _
    // Predicated region
    $region6: #{tpu_custom_call.1} parent=1 // pred_check
      _
    $region7: #{tpu_custom_call.1} parent=1 // pred_check_branch
      %24 = sbr.rel (0) target = $region9
    $region8: #{tpu_custom_call.1} parent=1 // pred_region
      %26 = vsyncadd [#allocation7], 0
      %s27 = sshll.u32 %s1, 4
      %s28 = int_to_ptr.hbm [resolvable:$true] %s27
      %s29 = sshll.u32 [#allocation6], 4
      %s30 = int_to_ptr.vmem [resolvable:$true] %s29
      %35 = dma.hbm_to_vmem [thread:$0]  %s28, 256, %s30, [#allocation7], 128, 128, 8
    $region9: #{tpu_custom_call.1} parent=1 // pred_fallthru
      _
    // Predicated region
    $region10: #{tpu_custom_call.1} parent=1 // pred_check
      _
    $region11: #{tpu_custom_call.1} parent=1 // pred_check_branch
      %37 = sbr.rel (0) target = $region13
    $region12: #{tpu_custom_call.1} parent=1 // pred_region
      %39 = dma.done [#allocation4], 256
    $region13: #{tpu_custom_call.1} parent=1 // pred_fallthru
      _
    // Predicated region
    $region14: #{tpu_custom_call.1} parent=1 // pred_check
      _
    $region15: #{tpu_custom_call.1} parent=1 // pred_check_branch
      %41 = sbr.rel (0) target = $region17
    $region16: #{tpu_custom_call.1} parent=1 // pred_region
      %43 = dma.done [#allocation7], 256
    $region17: #{tpu_custom_call.1} parent=1 // pred_fallthru
      _
    %v44 = vld [vmem:[#allocation3] sm:$0xff]
    %v45 = vld [vmem:[#allocation3 + $0x8] sm:$0xff]
    %v46 = vld [vmem:[#allocation6] sm:$0xff]
    %v47 = vld [vmem:[#allocation6 + $0x8] sm:$0xff]
    %vm48 = vcmask 261120
    %v50 = vsel %vm48, %v44, 0
    %52 = vmatpush.xpose.msra.mxu0 0.0
    %53 = vmatpush.xpose.msra.mxu0 0.0
    %54 = vmatpush.xpose.msra.mxu0 0.0
    %55 = vmatpush.xpose.msra.mxu0 0.0
    %56 = vmatpush.xpose.msra.mxu0 0.0
    %57 = vmatpush.xpose.msra.mxu0 0.0
    %58 = vmatpush.xpose.msra.mxu0 0.0
    %59 = vmatpush.xpose.msra.mxu0 0.0
    %60 = vmatpush.xpose.msra.mxu0 0.0
    %61 = vmatpush.xpose.msra.mxu0 0.0
    %62 = vmatpush.xpose.msra.mxu0 0.0
    %63 = vmatpush.xpose.msra.mxu0 0.0
    %64 = vmatpush.xpose.msra.mxu0 0.0
    %65 = vmatpush.xpose.msra.mxu0 0.0
    %66 = vmatpush.xpose.msra.mxu0 0.0
    %67 = vmatpush.xpose.msra.mxu0 %v50
    %68 = vmatmul.f32.gmra.mxu0 %v50
    %v69 = vpop.f32.mrf.mxu0
    %v70 = vadd.f32 0.0, %v69
    %71 = vdwg.mxu0
    %v73 = vsel %vm48, %v45, 0
    %75 = vmatpush.xpose.msra.mxu0 0.0
    %76 = vmatpush.xpose.msra.mxu0 0.0
    %77 = vmatpush.xpose.msra.mxu0 0.0
    %78 = vmatpush.xpose.msra.mxu0 0.0
    %79 = vmatpush.xpose.msra.mxu0 0.0
    %80 = vmatpush.xpose.msra.mxu0 0.0
    %81 = vmatpush.xpose.msra.mxu0 0.0
    %82 = vmatpush.xpose.msra.mxu0 0.0
    %83 = vmatpush.xpose.msra.mxu0 0.0
    %84 = vmatpush.xpose.msra.mxu0 0.0
    %85 = vmatpush.xpose.msra.mxu0 0.0
    %86 = vmatpush.xpose.msra.mxu0 0.0
    %87 = vmatpush.xpose.msra.mxu0 0.0
    %88 = vmatpush.xpose.msra.mxu0 0.0
    %89 = vmatpush.xpose.msra.mxu0 0.0
    %90 = vmatpush.xpose.msra.mxu0 %v73
    %91 = vmatmul.f32.gmra.mxu0 %v73
    %v92 = vpop.f32.mrf.mxu0
    %v93 = vadd.f32 0.0, %v92
    %94 = vdwg.mxu0
    %v96 = vsel %vm48, %v46, 0
    %98 = vmatpush.xpose.msra.mxu0 0.0
    %99 = vmatpush.xpose.msra.mxu0 0.0
    %100 = vmatpush.xpose.msra.mxu0 0.0
    %101 = vmatpush.xpose.msra.mxu0 0.0
    %102 = vmatpush.xpose.msra.mxu0 0.0
    %103 = vmatpush.xpose.msra.mxu0 0.0
    %104 = vmatpush.xpose.msra.mxu0 0.0
    %105 = vmatpush.xpose.msra.mxu0 0.0
    %106 = vmatpush.xpose.msra.mxu0 0.0
    %107 = vmatpush.xpose.msra.mxu0 0.0
    %108 = vmatpush.xpose.msra.mxu0 0.0
    %109 = vmatpush.xpose.msra.mxu0 0.0
    %110 = vmatpush.xpose.msra.mxu0 0.0
    %111 = vmatpush.xpose.msra.mxu0 0.0
    %112 = vmatpush.xpose.msra.mxu0 0.0
    %113 = vmatpush.xpose.msra.mxu0 %v96
    %114 = vmatmul.f32.gmra.mxu0 %v96
    %v115 = vpop.f32.mrf.mxu0
    %v116 = vadd.f32 0.0, %v115
    %117 = vdwg.mxu0
    %v119 = vsel %vm48, %v47, 0
    %121 = vmatpush.xpose.msra.mxu0 0.0
    %122 = vmatpush.xpose.msra.mxu0 0.0
    %123 = vmatpush.xpose.msra.mxu0 0.0
    %124 = vmatpush.xpose.msra.mxu0 0.0
    %125 = vmatpush.xpose.msra.mxu0 0.0
    %126 = vmatpush.xpose.msra.mxu0 0.0
    %127 = vmatpush.xpose.msra.mxu0 0.0
    %128 = vmatpush.xpose.msra.mxu0 0.0
    %129 = vmatpush.xpose.msra.mxu0 0.0
    %130 = vmatpush.xpose.msra.mxu0 0.0
    %131 = vmatpush.xpose.msra.mxu0 0.0
    %132 = vmatpush.xpose.msra.mxu0 0.0
    %133 = vmatpush.xpose.msra.mxu0 0.0
    %134 = vmatpush.xpose.msra.mxu0 0.0
    %135 = vmatpush.xpose.msra.mxu0 0.0
    %136 = vmatpush.xpose.msra.mxu0 %v119
    %137 = vmatmul.f32.gmra.mxu0 %v119
    %v138 = vpop.f32.mrf.mxu0
    %v139 = vadd.f32 0.0, %v138
    %140 = vdwg.mxu0
    %v141 = vmul.f32 %v70, %v70
    %v142 = vmul.f32 %v93, %v93
    %vm143 = vcmask 64512
    %v144 = vsel %vm143, %v141, 0.0
    %145 = vadd.xlane.f32.xlu0 %v144
    %v146 = vpop.xlane.xlu0 %145
    %v147 = vsel %vm143, %v142, 0.0
    %148 = vadd.xlane.f32.xlu0 %v147
    %v149 = vpop.xlane.xlu0 %148
    %v150 = vmul.f32 %v116, %v116
    %v151 = vmul.f32 %v139, %v139
    %v152 = vsel %vm143, %v150, 0.0
    %153 = vadd.xlane.f32.xlu0 %v152
    %v154 = vpop.xlane.xlu0 %153
    %v155 = vsel %vm143, %v151, 0.0
    %156 = vadd.xlane.f32.xlu0 %v155
    %v157 = vpop.xlane.xlu0 %156
    %v158 = vmax.f32 %v146, 1e-24
    %v159 = vmax.f32 %v149, 1e-24
    %v160 = vrsqrt.pop %v158
    %v161 = vmul.f32 %v160, %v158
    %v162 = vmul.f32 %v161, %v160
    %v163 = vmul.f32 0.5, %v162
    %v164 = vsub.f32 1.5, %v163
    %v165 = vmul.f32 %v160, %v164
    %vm166 = vweird.f32 %v158
    %vm167 = vweird.f32 %v160
    %vm168 = vmor %vm166, %vm167
    %v169 = vsel %vm168, %v160, %v165
    %v170 = vrsqrt.pop %v159
    %v171 = vmul.f32 %v170, %v159
    %v172 = vmul.f32 %v171, %v170
    %v173 = vmul.f32 0.5, %v172
    %v174 = vsub.f32 1.5, %v173
    %v175 = vmul.f32 %v170, %v174
    %vm176 = vweird.f32 %v159
    %vm177 = vweird.f32 %v170
    %vm178 = vmor %vm176, %vm177
    %v179 = vsel %vm178, %v170, %v175
    %v180 = vmax.f32 %v154, 1e-24
    %v181 = vmax.f32 %v157, 1e-24
    %v182 = vrsqrt.pop %v180
    %v183 = vmul.f32 %v182, %v180
    %v184 = vmul.f32 %v183, %v182
    %v185 = vmul.f32 0.5, %v184
    %v186 = vsub.f32 1.5, %v185
    %v187 = vmul.f32 %v182, %v186
    %vm188 = vweird.f32 %v180
    %vm189 = vweird.f32 %v182
    %vm190 = vmor %vm188, %vm189
    %v191 = vsel %vm190, %v182, %v187
    %v192 = vrsqrt.pop %v181
    %v193 = vmul.f32 %v192, %v181
    %v194 = vmul.f32 %v193, %v192
    %v195 = vmul.f32 0.5, %v194
    %v196 = vsub.f32 1.5, %v195
    %v197 = vmul.f32 %v192, %v196
    %vm198 = vweird.f32 %v181
    %vm199 = vweird.f32 %v192
    %vm200 = vmor %vm198, %vm199
    %v201 = vsel %vm200, %v192, %v197
    %v202 = vmul.f32 %v70, %v169
    %v203 = vmul.f32 %v93, %v179
    %v204 = vmul.f32 %v116, %v191
    %v205 = vmul.f32 %v139, %v201
    %v206 = vmul.f32 %v202, %v204
    %v207 = vmul.f32 %v203, %v205
    %v208 = vsel %vm143, %v206, 0.0
    %209 = vadd.xlane.f32.xlu0 %v208
    %v210 = vpop.xlane.xlu0 %209
    %v211 = vsel %vm143, %v207, 0.0
    %212 = vadd.xlane.f32.xlu0 %v211
    %v213 = vpop.xlane.xlu0 %212
    %v214 = vmul.f32 %v146, %v169
    %v215 = vmul.f32 %v149, %v179
    %v216 = vmul.f32 %v214, %v169
    %v217 = vmul.f32 %v215, %v179
    %v218 = vmul.f32 %v154, %v191
    %v219 = vmul.f32 %v157, %v201
    %v220 = vmul.f32 %v218, %v191
    %v221 = vmul.f32 %v219, %v201
    %v222 = vmul.f32 %v216, %v220
    %v223 = vmul.f32 %v217, %v221
    %v224 = vmax.f32 %v222, 1e-16
    %v225 = vmax.f32 %v223, 1e-16
    %v226 = vrsqrt.pop %v224
    %v227 = vmul.f32 %v226, %v224
    %v228 = vmul.f32 %v227, %v226
    %v229 = vmul.f32 0.5, %v228
    %v230 = vsub.f32 1.5, %v229
    %v231 = vmul.f32 %v226, %v230
    %vm232 = vweird.f32 %v224
    %vm233 = vweird.f32 %v226
    %vm234 = vmor %vm232, %vm233
    %v235 = vsel %vm234, %v226, %v231
    %v236 = vrsqrt.pop %v225
    %v237 = vmul.f32 %v236, %v225
    %v238 = vmul.f32 %v237, %v236
    %v239 = vmul.f32 0.5, %v238
    %v240 = vsub.f32 1.5, %v239
    %v241 = vmul.f32 %v236, %v240
    %vm242 = vweird.f32 %v225
    %vm243 = vweird.f32 %v236
    %vm244 = vmor %vm242, %vm243
    %v245 = vsel %vm244, %v236, %v241
    %v246 = vmul.f32 %v210, %v235
    %v247 = vmul.f32 %v213, %v245
    %v248 = vrot.slane %v246, 4
    %v249 = vadd.f32 %v246, %v248
    %v250 = vrot.slane %v249, 2
    %v251 = vadd.f32 %v249, %v250
    %v252 = vrot.slane %v251, 1
    %v253 = vadd.f32 %v251, %v252
    %v254 = vrot.slane %v247, 4
    %v255 = vadd.f32 %v247, %v254
    %v256 = vrot.slane %v255, 2
    %v257 = vadd.f32 %v255, %v256
    %v258 = vrot.slane %v257, 1
    %v259 = vadd.f32 %v257, %v258
    %v260 = vrcp.pop 8.0
    %v261 = vmul.f32 8.0, %v260
    %v262 = vsub.f32 1.0, %v261
    %v263 = vmul.f32 %v260, %v262
    %v264 = vadd.f32 %v260, %v263
    %vm265 = vweird.f32 %v260
    %v266 = vsel %vm265, %v260, %v264
    %v267 = vmul.f32 %v253, %v266
    %v268 = vmul.f32 %v259, %v266
    %v269 = vsub.f32 0.0, %v267
    %v270 = vsub.f32 0.0, %v268
    %v271 = vsub.f32 1.0, %v267
    %v272 = vsub.f32 1.0, %v268
    %v273 = vmul.f32 %v269, 0.5
    %v274 = vmul.f32 %v270, 0.5
    %v275 = vand.u32 2147483647, %v273
    %v276 = vand.u32 2147483647, %v274
    %v277 = vadd.f32 %v271, %v275
    %v278 = vadd.f32 %v272, %v276
    %s279 = smul.u32 0, 2
    %v280 = vlaneseq
    %v281 = vshrl.u32 %v280, 7
    %v282 = vstv %s279
    %v283 = vadd.s32 %v282, %v281
    %vm284 = vcmp.lt.s32.totalorder %v283, 2
    %v285 = vsel %vm284, 1, 0
    %v286 = vcvt.s32.f32 %v285
    %p287 = scmp.eq.s32.totalorder 0, 0
    // Predicated region
    $region18: #{tpu_custom_call.1} parent=1 // pred_check
      %p288 = pneg %p287
    $region19: #{tpu_custom_call.1} parent=1 // pred_check_branch
      %290 = sbr.rel (%p288) target = $region21
    $region20: #{tpu_custom_call.1} parent=1 // pred_region
      %vm291 = vcmask 1024
      %292 = vst.msk [vmem:[#allocation2] sm:$0x3] %vm291, 0.0
    $region21: #{tpu_custom_call.1} parent=1 // pred_fallthru
      _
    %v293 = vld [vmem:[#allocation2] sm:$0x3]
    %v295 = vrot.slane %v286, 1
    %v298 = vmul.f32 %v277, %v286
    %v299 = vmul.f32 %v278, %v295
    %v302 = vrot.slane %v299, 7
    %vm303 = vcmask 1041409
    %v304 = vsel %vm303, %v302, %v298
    %v306 = vadd.f32 %v293, %v304
    %vm307 = vcmask 1024
    %308 = vst.msk [vmem:[#allocation2] sm:$0x3] %vm307, %v306
    // Predicated region
    $region22: #{tpu_custom_call.1} parent=1 // pred_check
      %p309 = pneg %p287
    $region23: #{tpu_custom_call.1} parent=1 // pred_check_branch
      %311 = sbr.rel (%p309) target = $region25
    $region24: #{tpu_custom_call.1} parent=1 // pred_region
      %v312 = vld [vmem:[#allocation2] sm:$0x3]
      %v313 = vsel %vm307, %v312, 0.0
      %v314 = vrot.slane %v313, 4
      %v315 = vadd.f32 %v313, %v314
      %v316 = vrot.slane %v315, 2
      %v317 = vadd.f32 %v315, %v316
      %v318 = vrot.slane %v317, 1
      %v319 = vadd.f32 %v317, %v318
      %v320 = vlaneseq
      %v321 = vand.u32 %v320, 127
      %vm322 = vcmp.eq.s32.totalorder %v321, 0
      %324 = vset.pattern.permute.xlu0 0
      %325 = vperm.xlu0 %324, %v319
      %v326 = vpop.permute.xlu0 %325
      %v328 = vsel %vm322, %v326, 0.0
      %vm329 = vcmp.eq.s32.totalorder %v321, 1
      %v330 = vsel %vm329, %v268, %v328
      %vm331 = vcmp.eq.s32.totalorder %v321, 2
      %v332 = vsel %vm331, %v270, %v330
      %333 = vst [vmem:[#allocation8] sm:$0x1] %v332
    $region25: #{tpu_custom_call.1} parent=1 // pred_fallthru
      _
    // Predicated region
    $region26: #{tpu_custom_call.1} parent=1 // pred_check
      _
    $region27: #{tpu_custom_call.1} parent=1 // pred_check_branch
      %335 = sbr.rel (0) target = $region29
    $region28: #{tpu_custom_call.1} parent=1 // pred_region
      %337 = vsyncadd [#allocation5], 0
      %s339 = sshll.u32 [#allocation8], 4
      %s340 = int_to_ptr.vmem [resolvable:$true] %s339
      %s341 = sshll.u32 %s2, 4
      %s342 = int_to_ptr.hbm [resolvable:$true] %s341
      %344 = dma.vmem_to_hbm [thread:$0]  %s340, 16, %s342, [#allocation5]
    $region29: #{tpu_custom_call.1} parent=1 // pred_fallthru
      _
    // Predicated region
    $region30: #{tpu_custom_call.1} parent=1 // pred_check
      _
    $region31: #{tpu_custom_call.1} parent=1 // pred_check_branch
      %346 = sbr.rel (0) target = $region33
    $region32: #{tpu_custom_call.1} parent=1 // pred_region
      %348 = dma.done [#allocation5], 16
    $region33: #{tpu_custom_call.1} parent=1 // pred_fallthru
      _
    %349 = vsyncpa [#allocation4], 1
    %350 = vsyncpa [#allocation7], 1
    %351 = vsyncpa [#allocation5], 1

</llo_original>
